<compile_context>
chip_gen: v7x
topology: tpu7x:2x2x1
jax: 0.10.0
libtpu: 0.0.40
codegen_flags: <defaults>
</compile_context>

<pallas_src>
import math

import jax
import jax.numpy as jnp
from jax import lax
from jax.experimental import pallas as pl
from jax.experimental.pallas import tpu as pltpu


def _round_up(x, m):
    return (x + m - 1) // m * m


def ocn_att_kernel(ol_ref, olm_ref, ok_ref, w1_ref, w2_ref, w3_ref,
                   b1_ref, b2_ref, o_ref):
    # ol_ref : (Sl, Hp)   dot-dtype (bf16 on the fast path)
    # olm_ref: (1, Sl)    f32 raw 0/1 ol mask (row layout)
    # ok_ref : (Tk, Hp)   dot-dtype, current Sk tile
    # w1_ref : (1, Hp) dot-dtype   w2_ref: (1, Hp) f32   w3_ref: (1, Hp) dot-dtype
    # b1_ref, b2_ref: (1,) f32 scalars in SMEM
    # o_ref  : (Tk, 2*Hp)
    u = ol_ref[...]                       # (Sl, Hp)
    v = ok_ref[...]                       # (Tk, Hp)
    vf = v.astype(jnp.float32)            # reused for part2 and the output

    nt = (((1,), (1,)), ((), ()))         # contract last dims (A @ B^T), no relayout

    # part1^T (1, Sl) = W1 · ol  — tiny MXU op, folded once into the row term.
    part1_t = lax.dot_general(w1_ref[...], u, nt,
                              preferred_element_type=jnp.float32)
    # part3^T (Tk, Sl) = ok @ (W3 ⊙ ol)^T — main MXU matmul, dot-dtype in / f32 acc.
    part3_t = lax.dot_general(v, w3_ref[...] * u, nt,
                              preferred_element_type=jnp.float32)
    # part2 (Tk, 1) = W2 · ok as a VPU multiply + lane reduce (keeps the
    # degenerate N=1 matmul off the MXU).
    part2 = jnp.sum(vf * w2_ref[...], axis=-1, keepdims=True)

    # Fold every broadcast term before it touches the (Tk, Sl) tile.  The
    # ok-mask term is constant along the softmax axis -> mathematically a
    # no-op -> dropped entirely.
    row = part1_t + (1.0 - olm_ref[...]) * -10000.0 + b1_ref[0]   # (1, Sl)
    col = part2 + b2_ref[0]                                       # (Tk, 1)
    a_t = part3_t + row + col                                     # (Tk, Sl) == A^T, f32

    # softmax over the ol axis (dim=1 of A == lane axis of A^T); f32 stats,
    # normalization deferred past the second matmul.
    m = jnp.max(a_t, axis=-1, keepdims=True)
    e = jnp.exp(a_t - m)                                          # (Tk, Sl) f32
    s = jnp.sum(e, axis=-1, keepdims=True)                        # (Tk, 1)  f32

    # _OLK = (e @ ol) * (1/s): cast e at the MXU boundary, scale once per
    # (Tk, Hp) tile with an EUP reciprocal (free slot).
    olk = jnp.dot(e.astype(u.dtype), u, preferred_element_type=jnp.float32)
    olk = olk * pl.reciprocal(s, approx=True)                     # (Tk, Hp) f32

    # concat([ok - _OLK, ok * _OLK], -1): single lane-dense (Tk, 2*Hp) store.
    o_ref[...] = jnp.concatenate([vf - olk, vf * olk], axis=-1).astype(o_ref.dtype)


def ocn_att_layer(ol, ol_mask, ok, ok_mask, w1, b1, w2, b2, w3,
                  *, dot_dtype=jnp.bfloat16, tile_sk=256):
    """Pallas forward of OCN_Att_layer.

    ol: (B, Sl, H), ol_mask: (B, Sl), ok: (B, Sk, H), ok_mask: (B, Sk)
    w1, w2: (1, H) nn.Linear(H, 1) weights; b1, b2: (1,) biases; w3: (1, 1, H).
    Returns (B, Sk, 2H) = concat([ok - _OLK, ok * _OLK], -1).

    dot_dtype selects the MXU operand dtype (bf16 fast path / f32 exact path);
    mask + softmax math is always f32.  ok_mask is accepted for API parity but
    its additive term is constant along the softmax axis, so it cannot change
    the output (dead work in the reference too) and is not read.
    """
    del ok_mask  # mathematical no-op: constant along softmax dim=1

    B, Sl, H = ol.shape
    Sk = ok.shape[1]
    out_dtype = ol.dtype

    # Lane-dense layout: pad H up to a multiple of 128 so the (Sl,Hp)/(Tk,Hp)
    # input blocks and the (Tk, 2*Hp) output store are full-lane (no vst.msk).
    # Zero padding is exact: padded columns contribute 0 to every dot product
    # and produce zeros in the padded output columns (sliced off below).
    Hp = _round_up(H, 128)
    if Hp != H:
        padH = ((0, 0), (0, 0), (0, Hp - H))
        ol = jnp.pad(ol, padH)
        ok = jnp.pad(ok, padH)
    w1_p = jnp.pad(w1.reshape(1, H), ((0, 0), (0, Hp - H)))
    w2_p = jnp.pad(w2.reshape(1, H), ((0, 0), (0, Hp - H)))
    w3_p = jnp.pad(w3.reshape(1, H), ((0, 0), (0, Hp - H)))

    # MXU operands in dot_dtype; everything else f32.
    ol_c = ol.astype(dot_dtype)
    ok_c = ok.astype(dot_dtype)
    w1_c = w1_p.astype(dot_dtype)
    w3_c = w3_p.astype(dot_dtype)
    w2_c = w2_p.astype(jnp.float32)
    olm = ol_mask.astype(jnp.float32).reshape(B, 1, Sl)
    b1_s = b1.reshape(1).astype(jnp.float32)
    b2_s = b2.reshape(1).astype(jnp.float32)

    # Sk tiling: tiles are independent (softmax is over the resident Sl axis).
    Tk = Sk if Sk <= tile_sk else max(8, (tile_sk // 8) * 8)
    n_sk = pl.cdiv(Sk, Tk)

    dsize = jnp.dtype(dot_dtype).itemsize
    osize = jnp.dtype(out_dtype).itemsize
    # Explicit scoped-VMEM budget: double-buffered blocks + f32 intermediates,
    # 2x headroom, clamped to [default 32 MiB, v7x physical 64 MiB].
    block_bytes = 2 * (Sl * Hp * dsize + Sl * 4 + Tk * Hp * dsize
                       + Tk * 2 * Hp * osize + 3 * Hp * 4)
    interm_bytes = 4 * Tk * Sl * 4 + 4 * Tk * Hp * 4 + Sl * Hp * 4
    vmem_limit = int(min(max(2 * (block_bytes + interm_bytes),
                             32 * 1024 * 1024), 64 * 1024 * 1024))

    cost = pl.CostEstimate(
        flops=int(B * (4 * Sk * Sl * Hp + 2 * Sl * Hp + 3 * Sk * Hp
                       + 8 * Sk * Sl + 4 * Sk * Hp)),
        transcendentals=int(B * Sk * (Sl + 1)),
        bytes_accessed=int(ol_c.size * dsize + ok_c.size * dsize + olm.size * 4
                           + 3 * Hp * 4 + 8 + B * Sk * 2 * Hp * osize),
    )

    const2 = lambda b, s: (0, 0)            # weights: resident across all steps
    smem_spec = pl.BlockSpec(memory_space=pltpu.MemorySpace.SMEM)

    res = pl.pallas_call(
        ocn_att_kernel,
        out_shape=jax.ShapeDtypeStruct((B, Sk, 2 * Hp), out_dtype),
        grid=(B, n_sk),
        in_specs=[
            pl.BlockSpec((None, Sl, Hp), lambda b, s: (b, 0, 0)),   # ol
            pl.BlockSpec((None, 1, Sl), lambda b, s: (b, 0, 0)),    # ol_mask
            pl.BlockSpec((None, Tk, Hp), lambda b, s: (b, s, 0)),   # ok (Sk tile)
            pl.BlockSpec((1, Hp), const2),                          # W1
            pl.BlockSpec((1, Hp), const2),                          # W2
            pl.BlockSpec((1, Hp), const2),                          # W3
            smem_spec,                                              # b1 (SMEM scalar)
            smem_spec,                                              # b2 (SMEM scalar)
        ],
        out_specs=pl.BlockSpec((None, Tk, 2 * Hp), lambda b, s: (b, s, 0)),
        compiler_params=pltpu.CompilerParams(
            dimension_semantics=("parallel", "parallel"),
            vmem_limit_bytes=vmem_limit),
        cost_estimate=cost,
    )(ol_c, olm, ok_c, w1_c, w2_c, w3_c, b1_s, b2_s)

    if Hp != H:
        res = jnp.concatenate([res[..., :H], res[..., Hp:Hp + H]], axis=-1)
    return res


if __name__ == "__main__":
    B, Sl, Sk, H = 2, 8, 6, 32   # batch, ol seq, ok seq, hidden_size

    key = jax.random.PRNGKey(0)
    k_ol, k_ok, k_w1, k_b1, k_w2, k_b2, k_w3 = jax.random.split(key, 7)

    ol = jax.random.normal(k_ol, (B, Sl, H), dtype=jnp.float32)
    ok = jax.random.normal(k_ok, (B, Sk, H), dtype=jnp.float32)

    # 1 = valid token, 0 = padding (masked).
    ol_mask = jnp.ones((B, Sl), dtype=jnp.float32).at[:, -2:].set(0.0)
    ok_mask = jnp.ones((B, Sk), dtype=jnp.float32).at[1, -1:].set(0.0)

    bound = 1.0 / math.sqrt(H)
    w1 = jax.random.uniform(k_w1, (1, H), minval=-bound, maxval=bound, dtype=jnp.float32)
    b1 = jax.random.uniform(k_b1, (1,), minval=-bound, maxval=bound, dtype=jnp.float32)
    w2 = jax.random.uniform(k_w2, (1, H), minval=-bound, maxval=bound, dtype=jnp.float32)
    b2 = jax.random.uniform(k_b2, (1,), minval=-bound, maxval=bound, dtype=jnp.float32)
    w3 = jax.random.uniform(k_w3, (1, 1, H), minval=-bound, maxval=bound, dtype=jnp.float32)

    # Pure-JAX reference with the exact PyTorch forward semantics (f32).
    part1 = jnp.einsum('blh,oh->blo', ol, w1) + b1                        # (B, Sl, 1)
    part2 = (jnp.einsum('bkh,oh->bko', ok, w2) + b2).transpose(0, 2, 1)   # (B, 1, Sk)
    part3 = jnp.einsum('blh,bkh->blk', w3.reshape(1, 1, H) * ol, ok)      # (B, Sl, Sk)
    A = (part1 + part2 + part3
         + ((1.0 - ol_mask) * -10000.0)[:, :, None]
         + ((1.0 - ok_mask) * -10000.0)[:, None, :])
    att = jax.nn.softmax(A, axis=1)                                       # over Sl
    _OLK = jnp.einsum('blh,blk->bkh', ol, att)                            # (B, Sk, H)
    ref = jnp.concatenate([ok - _OLK, ok * _OLK], axis=2)                 # (B, Sk, 2H)

    # Exact path: f32 operands at the MXU (tight check).
    out_f32 = jax.block_until_ready(
        ocn_att_layer(ol, ol_mask, ok, ok_mask, w1, b1, w2, b2, w3,
                      dot_dtype=jnp.float32))
    assert out_f32.shape == (B, Sk, 2 * H)
    assert jnp.allclose(out_f32, ref, atol=5e-3, rtol=5e-3), "f32 path mismatch"

    # Fast path (default): bf16 operands at the MXU, f32 softmax/accumulation.
    out_bf16 = jax.block_until_ready(
        ocn_att_layer(ol, ol_mask, ok, ok_mask, w1, b1, w2, b2, w3))
    assert out_bf16.shape == (B, Sk, 2 * H)
    assert jnp.allclose(out_bf16, ref, atol=5e-2, rtol=5e-2), "bf16 path mismatch"

    print("KERNEL_OK")
</pallas_src>

<mosaic_0001>
module attributes {stable_mosaic.version = 11 : i64} {
  func.func @ocn_att_kernel(%arg0: i32, %arg1: i32, %arg2: memref<1x8x128xf32, #tpu.memory_space<vmem>>, %arg3: memref<1x1x8xf32, #tpu.memory_space<vmem>>, %arg4: memref<1x6x128xf32, #tpu.memory_space<vmem>>, %arg5: memref<1x128xf32, #tpu.memory_space<vmem>>, %arg6: memref<1x128xf32, #tpu.memory_space<vmem>>, %arg7: memref<1x128xf32, #tpu.memory_space<vmem>>, %arg8: memref<1xf32, #tpu.memory_space<smem>>, %arg9: memref<1xf32, #tpu.memory_space<smem>>, %arg10: memref<1x6x256xf32, #tpu.memory_space<vmem>>) attributes {dimension_semantics = [#tpu.dimension_semantics<parallel>, #tpu.dimension_semantics<parallel>], iteration_bounds = array<i64: 2, 1>, scalar_prefetch = 0 : i64, scratch_operands = 0 : i64, tpu.core_type = #tpu.core_type<tc>, window_params = [{transform_indices = @transform_0, window_bounds = array<i64: 1, 8, 128>}, {transform_indices = @transform_1, window_bounds = array<i64: 1, 1, 8>}, {transform_indices = @transform_2, window_bounds = array<i64: 1, 6, 128>}, {pipeline_mode = #tpu.pipeline_mode<synchronous>, transform_indices = @transform_3, window_bounds = array<i64: 1, 128>}, {pipeline_mode = #tpu.pipeline_mode<synchronous>, transform_indices = @transform_4, window_bounds = array<i64: 1, 128>}, {pipeline_mode = #tpu.pipeline_mode<synchronous>, transform_indices = @transform_5, window_bounds = array<i64: 1, 128>}, {transform_indices = @transform_6, window_bounds = array<i64: 1>}, {transform_indices = @transform_7, window_bounds = array<i64: 1>}, {transform_indices = @transform_8, window_bounds = array<i64: 1, 6, 256>}]} {
    %c0 = arith.constant 0 : index
    %c0_0 = arith.constant 0 : index
    %c0_1 = arith.constant 0 : index
    %0 = vector.load %arg2[%c0, %c0_0, %c0_1] : memref<1x8x128xf32, #tpu.memory_space<vmem>>, vector<1x8x128xf32>
    %1 = vector.shape_cast %0 : vector<1x8x128xf32> to vector<8x128xf32>
    %c0_2 = arith.constant 0 : index
    %c0_3 = arith.constant 0 : index
    %c0_4 = arith.constant 0 : index
    %2 = vector.load %arg4[%c0_2, %c0_3, %c0_4] : memref<1x6x128xf32, #tpu.memory_space<vmem>>, vector<1x6x128xf32>
    %3 = vector.shape_cast %2 : vector<1x6x128xf32> to vector<6x128xf32>
    %c0_5 = arith.constant 0 : index
    %c0_6 = arith.constant 0 : index
    %4 = vector.load %arg5[%c0_5, %c0_6] : memref<1x128xf32, #tpu.memory_space<vmem>>, vector<1x128xf32>
    %cst = arith.constant dense<0.000000e+00> : vector<1x8xf32>
    %5 = tpu.matmul %4, %1, %cst {dimension_numbers = #tpu.dot_dimension_numbers<[1], [1], [0], [0], [0, 0, 1, 0], [], []>} : vector<1x128xf32>, vector<8x128xf32>, vector<1x8xf32> -> vector<1x8xf32>
    %c0_7 = arith.constant 0 : index
    %c0_8 = arith.constant 0 : index
    %6 = vector.load %arg7[%c0_7, %c0_8] : memref<1x128xf32, #tpu.memory_space<vmem>>, vector<1x128xf32>
    %7 = vector.broadcast %6 : vector<1x128xf32> to vector<8x128xf32>
    %8 = arith.mulf %7, %1 : vector<8x128xf32>
    %cst_9 = arith.constant dense<0.000000e+00> : vector<6x8xf32>
    %9 = tpu.matmul %3, %8, %cst_9 {dimension_numbers = #tpu.dot_dimension_numbers<[1], [1], [0], [0], [0, 0, 1, 0], [], []>} : vector<6x128xf32>, vector<8x128xf32>, vector<6x8xf32> -> vector<6x8xf32>
    %c0_10 = arith.constant 0 : index
    %c0_11 = arith.constant 0 : index
    %10 = vector.load %arg6[%c0_10, %c0_11] : memref<1x128xf32, #tpu.memory_space<vmem>>, vector<1x128xf32>
    %11 = vector.broadcast %10 : vector<1x128xf32> to vector<6x128xf32>
    %12 = arith.mulf %3, %11 : vector<6x128xf32>
    %cst_12 = arith.constant dense<0.000000e+00> : vector<6xf32>
    %13 = vector.multi_reduction <add>, %12, %cst_12 [1] : vector<6x128xf32> to vector<6xf32>
    %14 = vector.shape_cast %13 : vector<6xf32> to vector<6x1xf32>
    %c0_13 = arith.constant 0 : index
    %c0_14 = arith.constant 0 : index
    %c0_15 = arith.constant 0 : index
    %15 = vector.load %arg3[%c0_13, %c0_14, %c0_15] : memref<1x1x8xf32, #tpu.memory_space<vmem>>, vector<1x1x8xf32>
    %16 = vector.shape_cast %15 : vector<1x1x8xf32> to vector<1x8xf32>
    %cst_16 = arith.constant 1.000000e+00 : f32
    %17 = vector.broadcast %cst_16 : f32 to vector<1x8xf32>
    %18 = arith.subf %17, %16 : vector<1x8xf32>
    %cst_17 = arith.constant -1.000000e+04 : f32
    %19 = vector.broadcast %cst_17 : f32 to vector<1x8xf32>
    %20 = arith.mulf %18, %19 : vector<1x8xf32>
    %21 = arith.addf %5, %20 : vector<1x8xf32>
    %c0_18 = arith.constant 0 : index
    %22 = memref.load %arg8[%c0_18] : memref<1xf32, #tpu.memory_space<smem>>
    %23 = vector.broadcast %22 : f32 to vector<1x8xf32>
    %24 = arith.addf %21, %23 : vector<1x8xf32>
    %c0_19 = arith.constant 0 : index
    %25 = memref.load %arg9[%c0_19] : memref<1xf32, #tpu.memory_space<smem>>
    %26 = vector.broadcast %25 : f32 to vector<6x1xf32>
    %27 = arith.addf %14, %26 : vector<6x1xf32>
    %28 = vector.broadcast %24 : vector<1x8xf32> to vector<6x8xf32>
    %29 = arith.addf %9, %28 : vector<6x8xf32>
    %30 = vector.broadcast %27 : vector<6x1xf32> to vector<6x8xf32>
    %31 = arith.addf %29, %30 : vector<6x8xf32>
    %cst_20 = arith.constant dense<0xFF800000> : vector<6xf32>
    %32 = vector.multi_reduction <maximumf>, %31, %cst_20 [1] : vector<6x8xf32> to vector<6xf32>
    %33 = vector.shape_cast %32 : vector<6xf32> to vector<6x1xf32>
    %34 = vector.broadcast %33 : vector<6x1xf32> to vector<6x8xf32>
    %35 = arith.subf %31, %34 : vector<6x8xf32>
    %36 = math.exp %35 : vector<6x8xf32>
    %cst_21 = arith.constant dense<0.000000e+00> : vector<6xf32>
    %37 = vector.multi_reduction <add>, %36, %cst_21 [1] : vector<6x8xf32> to vector<6xf32>
    %38 = vector.shape_cast %37 : vector<6xf32> to vector<6x1xf32>
    %cst_22 = arith.constant dense<0.000000e+00> : vector<6x128xf32>
    %39 = tpu.matmul %36, %1, %cst_22 {dimension_numbers = #tpu.dot_dimension_numbers<[1], [0], [0], [1], [0, 0, 1, 1], [], []>} : vector<6x8xf32>, vector<8x128xf32>, vector<6x128xf32> -> vector<6x128xf32>
    %40 = tpu.reciprocal %38 {approx = true} : vector<6x1xf32> -> vector<6x1xf32>
    %41 = vector.broadcast %40 : vector<6x1xf32> to vector<6x128xf32>
    %42 = arith.mulf %39, %41 : vector<6x128xf32>
    %43 = arith.subf %3, %42 : vector<6x128xf32>
    %44 = arith.mulf %3, %42 : vector<6x128xf32>
    %45 = tpu.concatenate %43, %44 in 1 : vector<6x128xf32>, vector<6x128xf32> -> vector<6x256xf32>
    %c0_23 = arith.constant 0 : index
    %c0_24 = arith.constant 0 : index
    %c0_25 = arith.constant 0 : index
    %46 = vector.load %arg10[%c0_23, %c0_24, %c0_25] : memref<1x6x256xf32, #tpu.memory_space<vmem>>, vector<1x6x256xf32>
    %47 = vector.shape_cast %46 : vector<1x6x256xf32> to vector<6x256xf32>
    %48 = vector.shape_cast %45 : vector<6x256xf32> to vector<1x6x256xf32>
    tpu.vector_store %arg10[%c0_23, %c0_24, %c0_25], %48 {strides = array<i32>} : memref<1x6x256xf32, #tpu.memory_space<vmem>>, vector<1x6x256xf32>,
    return
  }
  func.func @transform_0(%arg0: i32, %arg1: i32) -> (i32, i32, i32) {
    %c0_i32 = arith.constant 0 : i32
    %c0_i32_0 = arith.constant 0 : i32
    %c0_i32_1 = arith.constant 0 : i32
    return %arg0, %c0_i32, %c0_i32_0 : i32, i32, i32
  }
  func.func @transform_1(%arg0: i32, %arg1: i32) -> (i32, i32, i32) {
    %c0_i32 = arith.constant 0 : i32
    %c0_i32_0 = arith.constant 0 : i32
    %c0_i32_1 = arith.constant 0 : i32
    return %arg0, %c0_i32, %c0_i32_0 : i32, i32, i32
  }
  func.func @transform_2(%arg0: i32, %arg1: i32) -> (i32, i32, i32) {
    %c0_i32 = arith.constant 0 : i32
    %c0_i32_0 = arith.constant 0 : i32
    return %arg0, %arg1, %c0_i32 : i32, i32, i32
  }
  func.func @transform_3(%arg0: i32, %arg1: i32) -> (i32, i32) {
    %c0_i32 = arith.constant 0 : i32
    %c0_i32_0 = arith.constant 0 : i32
    %c0_i32_1 = arith.constant 0 : i32
    return %c0_i32, %c0_i32_0 : i32, i32
  }
  func.func @transform_4(%arg0: i32, %arg1: i32) -> (i32, i32) {
    %c0_i32 = arith.constant 0 : i32
    %c0_i32_0 = arith.constant 0 : i32
    %c0_i32_1 = arith.constant 0 : i32
    return %c0_i32, %c0_i32_0 : i32, i32
  }
  func.func @transform_5(%arg0: i32, %arg1: i32) -> (i32, i32) {
    %c0_i32 = arith.constant 0 : i32
    %c0_i32_0 = arith.constant 0 : i32
    %c0_i32_1 = arith.constant 0 : i32
    return %c0_i32, %c0_i32_0 : i32, i32
  }
  func.func @transform_6(%arg0: i32, %arg1: i32) -> i32 {
    %c0_i32 = arith.constant 0 : i32
    %c0_i32_0 = arith.constant 0 : i32
    return %c0_i32 : i32
  }
  func.func @transform_7(%arg0: i32, %arg1: i32) -> i32 {
    %c0_i32 = arith.constant 0 : i32
    %c0_i32_0 = arith.constant 0 : i32
    return %c0_i32 : i32
  }
  func.func @transform_8(%arg0: i32, %arg1: i32) -> (i32, i32, i32) {
    %c0_i32 = arith.constant 0 : i32
    %c0_i32_0 = arith.constant 0 : i32
    return %arg0, %arg1, %c0_i32 : i32, i32, i32
  }
}

</mosaic_0001>

<llo_original>
// kernel: tpu_custom_call.1
$region0: #{tpu_custom_call.1}
  #allocation0 [shape = 'u32[]', space=smem, size = 0x4, offset = 0x4, fixed_abs, tag = 'smem constant byte address 0x4 - core index']
  #allocation1 [shape = 'u32[144,128]{1,0:T(1,128)}', space=vmem, size = 0x12000, scoped, tag = 'internal scratch']
  #allocation2 [shape = 'f32[1]{0:T(128)S(6)}', space=smem, size = 0x200, scoped, tag = 'scoped memory for tpu_custom_call.1']
  #allocation3 [shape = 'f32[1]{0:T(128)S(6)}', space=smem, size = 0x200, scoped, tag = 'scoped memory for tpu_custom_call.1']
  %s0 = inlined_call_operand.vmem [shape: f32[2,8,128], index: 0, kind: input, shape index: {}]
  %s1 = inlined_call_operand.vmem [shape: f32[2,1,8], index: 1, kind: input, shape index: {}]
  %s2 = inlined_call_operand.vmem [shape: f32[2,6,128], index: 2, kind: input, shape index: {}]
  %s3 = inlined_call_operand.vmem [shape: f32[1,128], index: 3, kind: input, shape index: {}]
  %s4 = inlined_call_operand.vmem [shape: f32[1,128], index: 4, kind: input, shape index: {}]
  %s5 = inlined_call_operand.vmem [shape: f32[1,128], index: 5, kind: input, shape index: {}]
  %s6 = inlined_call_operand.<no memory space> [shape: f32[1], index: 6, kind: input, shape index: {}]
  %s7 = inlined_call_operand.<no memory space> [shape: f32[1], index: 7, kind: input, shape index: {}]
  %s8 = inlined_call_operand.vmem [shape: f32[2,6,256], index: 8, kind: output, shape index: {}]
  %s9 = sld [smem:[#allocation0]]
  $region65: #{tpu_custom_call.1} parent=0
    _
  %s11 = ssub.s32 1, %s9
  %s12 = scalar_select 0, %s11, %s9
  %13 = sst [smem:[#allocation2]] %s6
  %14 = sst [smem:[#allocation3]] %s7
  loop: start=0, step=1, limit=4
  $region2: #{tpu_custom_call.1} parent=0 // loop_pre_header
    _
  $region3: #{tpu_custom_call.1} parent=0 // loop_header
    %s16 = sphi 0, %s20
    %p17 = scmp.ge.s32.totalorder %s16, 4
    %s23 = sphi 0, %s35
    %s24 = sphi 0, %s31
    %s25 = sphi 0, %s23
    %s26 = sphi 0, %s24
    %s27 = sphi 0, %s25
    %s28 = sphi 0, %s26
    %s38 = sphi 0, %s40
    %s41 = sphi 0, %s38
    %s42 = sphi 0, %s41
    %s58 = sphi 0, %s42
    %s64 = sphi 0, %s66
    %s67 = sphi 0, %s64
    %s68 = sphi 0, %s67
    %s84 = sphi 0, %s68
    %s92 = sphi 0, %s94
    %s95 = sphi 0, %s92
    %s96 = sphi 0, %s95
    %s112 = sphi 0, %s96
    %s116 = sphi 0, %s116
    %s118 = sphi 0, %s116
    %s119 = sphi 0, %s118
    %s133 = sphi 0, %s119
    %s137 = sphi 0, %s137
    %s139 = sphi 0, %s137
    %s140 = sphi 0, %s139
    %s154 = sphi 0, %s140
    %s158 = sphi 0, %s158
    %s160 = sphi 0, %s158
    %s161 = sphi 0, %s160
    %s175 = sphi 0, %s161
    %s179 = sphi 0, %s179
    %s181 = sphi 0, %s179
    %s182 = sphi 0, %s181
    %s196 = sphi 0, %s182
    %s200 = sphi 0, %s200
    %s202 = sphi 0, %s200
    %s203 = sphi 0, %s202
    %s217 = sphi 0, %s203
    %s225 = sphi 0, %s227
    %s228 = sphi 0, %s225
    %s229 = sphi 0, %s228
    %s245 = sphi 0, %s229
  $region4: #{tpu_custom_call.1} parent=0 // loop_header_branch
    %19 = sbr.rel (%p17) target = $region8
  $region5: #{tpu_custom_call.1} parent=0 // loop_body
    %s21 = ssub.s32 %s16, 1
    %s22 = ssub.s32 %s16, 2
    %s29 = sadd.s32 1, %s24
    %p30 = scmp.ge.s32.totalorder %s29, 1
    %s31 = scalar_select %p30, 0, %s29
    %s32 = sadd.s32 1, %s23
    %s33 = scalar_select %p30, %s32, %s23
    %p34 = scmp.ge.s32.totalorder %s33, 2
    %s35 = scalar_select %p34, 0, %s33
    %s36 = ssub.s32 %s23, %s35
    %p37 = scmp.eq.s32.totalorder %s36, 0
    %s39 = sadd.s32 %s38, 1
    %s40 = scalar_select %p37, %s38, %s39
    %p43 = pneg %p37
    %p44 = scmp.eq.s32.totalorder %s16, 1
    %p45 = por %p43, %p44
    %p46 = scmp.ne.s32.totalorder %s38, %s41
    %p47 = scmp.eq.s32.totalorder %s16, 0
    %p48 = por %p46, %p47
    %p49 = scmp.ne.s32.totalorder %s38, %s41
    %p50 = scmp.eq.s32.totalorder %s21, 1
    %p51 = por %p49, %p50
    %p52 = scmp.ne.s32.totalorder %s41, %s42
    %p53 = scmp.eq.s32.totalorder %s21, 0
    %p54 = por %p52, %p53
    %p55 = scmp.ne.s32.totalorder %s41, %s42
    %p56 = scmp.eq.s32.totalorder %s22, 1
    %p57 = por %p55, %p56
    %p59 = scmp.ne.s32.totalorder %s42, %s58
    %p60 = scmp.eq.s32.totalorder %s22, 0
    %p61 = por %p59, %p60
    %s62 = ssub.s32 %s23, %s35
    %p63 = scmp.eq.s32.totalorder %s62, 0
    %s65 = sadd.s32 %s64, 1
    %s66 = scalar_select %p63, %s64, %s65
    %p69 = pneg %p63
    %p70 = scmp.eq.s32.totalorder %s16, 1
    %p71 = por %p69, %p70
    %p72 = scmp.ne.s32.totalorder %s64, %s67
    %p73 = scmp.eq.s32.totalorder %s16, 0
    %p74 = por %p72, %p73
    %p75 = scmp.ne.s32.totalorder %s64, %s67
    %p76 = scmp.eq.s32.totalorder %s21, 1
    %p77 = por %p75, %p76
    %p78 = scmp.ne.s32.totalorder %s67, %s68
    %p79 = scmp.eq.s32.totalorder %s21, 0
    %p80 = por %p78, %p79
    %p81 = scmp.ne.s32.totalorder %s67, %s68
    %p82 = scmp.eq.s32.totalorder %s22, 1
    %p83 = por %p81, %p82
    %p85 = scmp.ne.s32.totalorder %s68, %s84
    %p86 = scmp.eq.s32.totalorder %s22, 0
    %p87 = por %p85, %p86
    %s88 = ssub.s32 %s23, %s35
    %s89 = ssub.s32 %s24, %s31
    %s90 = sor.u32 %s88, %s89
    %p91 = scmp.eq.s32.totalorder %s90, 0
    %s93 = sadd.s32 %s92, 1
    %s94 = scalar_select %p91, %s92, %s93
    %p97 = pneg %p91
    %p98 = scmp.eq.s32.totalorder %s16, 1
    %p99 = por %p97, %p98
    %p100 = scmp.ne.s32.totalorder %s92, %s95
    %p101 = scmp.eq.s32.totalorder %s16, 0
    %p102 = por %p100, %p101
    %p103 = scmp.ne.s32.totalorder %s92, %s95
    %p104 = scmp.eq.s32.totalorder %s21, 1
    %p105 = por %p103, %p104
    %p106 = scmp.ne.s32.totalorder %s95, %s96
    %p107 = scmp.eq.s32.totalorder %s21, 0
    %p108 = por %p106, %p107
    %p109 = scmp.ne.s32.totalorder %s95, %s96
    %p110 = scmp.eq.s32.totalorder %s22, 1
    %p111 = por %p109, %p110
    %p113 = scmp.ne.s32.totalorder %s96, %s112
    %p114 = scmp.eq.s32.totalorder %s22, 0
    %p115 = por %p113, %p114
    %s117 = sadd.s32 %s116, 1
    %p120 = scmp.eq.s32.totalorder %s16, 1
    %p121 = scmp.ne.s32.totalorder %s116, %s118
    %p122 = scmp.eq.s32.totalorder %s16, 0
    %p123 = por %p121, %p122
    %p124 = scmp.ne.s32.totalorder %s116, %s118
    %p125 = scmp.eq.s32.totalorder %s21, 1
    %p126 = por %p124, %p125
    %p127 = scmp.ne.s32.totalorder %s118, %s119
    %p128 = scmp.eq.s32.totalorder %s21, 0
    %p129 = por %p127, %p128
    %p130 = scmp.ne.s32.totalorder %s118, %s119
    %p131 = scmp.eq.s32.totalorder %s22, 1
    %p132 = por %p130, %p131
    %p134 = scmp.ne.s32.totalorder %s119, %s133
    %p135 = scmp.eq.s32.totalorder %s22, 0
    %p136 = por %p134, %p135
    %s138 = sadd.s32 %s137, 1
    %p141 = scmp.eq.s32.totalorder %s16, 1
    %p142 = scmp.ne.s32.totalorder %s137, %s139
    %p143 = scmp.eq.s32.totalorder %s16, 0
    %p144 = por %p142, %p143
    %p145 = scmp.ne.s32.totalorder %s137, %s139
    %p146 = scmp.eq.s32.totalorder %s21, 1
    %p147 = por %p145, %p146
    %p148 = scmp.ne.s32.totalorder %s139, %s140
    %p149 = scmp.eq.s32.totalorder %s21, 0
    %p150 = por %p148, %p149
    %p151 = scmp.ne.s32.totalorder %s139, %s140
    %p152 = scmp.eq.s32.totalorder %s22, 1
    %p153 = por %p151, %p152
    %p155 = scmp.ne.s32.totalorder %s140, %s154
    %p156 = scmp.eq.s32.totalorder %s22, 0
    %p157 = por %p155, %p156
    %s159 = sadd.s32 %s158, 1
    %p162 = scmp.eq.s32.totalorder %s16, 1
    %p163 = scmp.ne.s32.totalorder %s158, %s160
    %p164 = scmp.eq.s32.totalorder %s16, 0
    %p165 = por %p163, %p164
    %p166 = scmp.ne.s32.totalorder %s158, %s160
    %p167 = scmp.eq.s32.totalorder %s21, 1
    %p168 = por %p166, %p167
    %p169 = scmp.ne.s32.totalorder %s160, %s161
    %p170 = scmp.eq.s32.totalorder %s21, 0
    %p171 = por %p169, %p170
    %p172 = scmp.ne.s32.totalorder %s160, %s161
    %p173 = scmp.eq.s32.totalorder %s22, 1
    %p174 = por %p172, %p173
    %p176 = scmp.ne.s32.totalorder %s161, %s175
    %p177 = scmp.eq.s32.totalorder %s22, 0
    %p178 = por %p176, %p177
    %s180 = sadd.s32 %s179, 1
    %p183 = scmp.eq.s32.totalorder %s16, 1
    %p184 = scmp.ne.s32.totalorder %s179, %s181
    %p185 = scmp.eq.s32.totalorder %s16, 0
    %p186 = por %p184, %p185
    %p187 = scmp.ne.s32.totalorder %s179, %s181
    %p188 = scmp.eq.s32.totalorder %s21, 1
    %p189 = por %p187, %p188
    %p190 = scmp.ne.s32.totalorder %s181, %s182
    %p191 = scmp.eq.s32.totalorder %s21, 0
    %p192 = por %p190, %p191
    %p193 = scmp.ne.s32.totalorder %s181, %s182
    %p194 = scmp.eq.s32.totalorder %s22, 1
    %p195 = por %p193, %p194
    %p197 = scmp.ne.s32.totalorder %s182, %s196
    %p198 = scmp.eq.s32.totalorder %s22, 0
    %p199 = por %p197, %p198
    %s201 = sadd.s32 %s200, 1
    %p204 = scmp.eq.s32.totalorder %s16, 1
    %p205 = scmp.ne.s32.totalorder %s200, %s202
    %p206 = scmp.eq.s32.totalorder %s16, 0
    %p207 = por %p205, %p206
    %p208 = scmp.ne.s32.totalorder %s200, %s202
    %p209 = scmp.eq.s32.totalorder %s21, 1
    %p210 = por %p208, %p209
    %p211 = scmp.ne.s32.totalorder %s202, %s203
    %p212 = scmp.eq.s32.totalorder %s21, 0
    %p213 = por %p211, %p212
    %p214 = scmp.ne.s32.totalorder %s202, %s203
    %p215 = scmp.eq.s32.totalorder %s22, 1
    %p216 = por %p214, %p215
    %p218 = scmp.ne.s32.totalorder %s203, %s217
    %p219 = scmp.eq.s32.totalorder %s22, 0
    %p220 = por %p218, %p219
    %s221 = ssub.s32 %s23, %s35
    %s222 = ssub.s32 %s24, %s31
    %s223 = sor.u32 %s221, %s222
    %p224 = scmp.eq.s32.totalorder %s223, 0
    %s226 = sadd.s32 %s225, 1
    %s227 = scalar_select %p224, %s225, %s226
    %p230 = pneg %p224
    %p231 = scmp.eq.s32.totalorder %s16, 1
    %p232 = por %p230, %p231
    %p233 = scmp.ne.s32.totalorder %s225, %s228
    %p234 = scmp.eq.s32.totalorder %s16, 0
    %p235 = por %p233, %p234
    %p236 = scmp.ne.s32.totalorder %s225, %s228
    %p237 = scmp.eq.s32.totalorder %s21, 1
    %p238 = por %p236, %p237
    %p239 = scmp.ne.s32.totalorder %s228, %s229
    %p240 = scmp.eq.s32.totalorder %s21, 0
    %p241 = por %p239, %p240
    %p242 = scmp.ne.s32.totalorder %s228, %s229
    %p243 = scmp.eq.s32.totalorder %s22, 1
    %p244 = por %p242, %p243
    %p246 = scmp.ne.s32.totalorder %s229, %s245
    %p247 = scmp.eq.s32.totalorder %s22, 0
    %p248 = por %p246, %p247
    %p249 = scmp.le.s32.totalorder 1, %s16
    %p250 = scmp.lt.s32.totalorder %s16, 3
    %p251 = pnand %p249, %p250
    %p252 = pneg %p251
    // Predicated region
    $region9: #{tpu_custom_call.1} parent=5 // pred_check
      _
    $region10: #{tpu_custom_call.1} parent=5 // pred_check_branch
      %254 = sbr.rel (%p251) target = $region12
    $region11: #{tpu_custom_call.1} parent=5 // pred_region
      %s255 = ssub.s32 %s16, 1
      // Predicated region
      $region13: #{tpu_custom_call.1} parent=11 // pred_check
        %p256 = pneg %p129
      $region14: #{tpu_custom_call.1} parent=11 // pred_check_branch
        %258 = sbr.rel (%p256) target = $region16
      $region15: #{tpu_custom_call.1} parent=11 // pred_region
        _
      $region16: #{tpu_custom_call.1} parent=11 // pred_fallthru
        _
      // Predicated region
      $region17: #{tpu_custom_call.1} parent=11 // pred_check
        %p259 = pneg %p150
      $region18: #{tpu_custom_call.1} parent=11 // pred_check_branch
        %261 = sbr.rel (%p259) target = $region20
      $region19: #{tpu_custom_call.1} parent=11 // pred_region
        _
      $region20: #{tpu_custom_call.1} parent=11 // pred_fallthru
        _
      // Predicated region
      $region21: #{tpu_custom_call.1} parent=11 // pred_check
        %p262 = pneg %p171
      $region22: #{tpu_custom_call.1} parent=11 // pred_check_branch
        %264 = sbr.rel (%p262) target = $region24
      $region23: #{tpu_custom_call.1} parent=11 // pred_region
        _
      $region24: #{tpu_custom_call.1} parent=11 // pred_fallthru
        _
      // Predicated region
      $region25: #{tpu_custom_call.1} parent=11 // pred_check
        %p265 = pneg %p192
      $region26: #{tpu_custom_call.1} parent=11 // pred_check_branch
        %267 = sbr.rel (%p265) target = $region28
      $region27: #{tpu_custom_call.1} parent=11 // pred_region
        _
      $region28: #{tpu_custom_call.1} parent=11 // pred_fallthru
        _
      // Predicated region
      $region29: #{tpu_custom_call.1} parent=11 // pred_check
        %p268 = pneg %p213
      $region30: #{tpu_custom_call.1} parent=11 // pred_check_branch
        %270 = sbr.rel (%p268) target = $region32
      $region31: #{tpu_custom_call.1} parent=11 // pred_region
        _
      $region32: #{tpu_custom_call.1} parent=11 // pred_fallthru
        _
    $region12: #{tpu_custom_call.1} parent=5 // pred_fallthru
      _
    %p271 = scmp.lt.s32.totalorder %s16, 2
    // Predicated region
    $region33: #{tpu_custom_call.1} parent=5 // pred_check
      %p272 = pneg %p271
    $region34: #{tpu_custom_call.1} parent=5 // pred_check_branch
      %274 = sbr.rel (%p272) target = $region36
    $region35: #{tpu_custom_call.1} parent=5 // pred_region
      // Predicated region
      $region37: #{tpu_custom_call.1} parent=35 // pred_check
        %p275 = pneg %p48
      $region38: #{tpu_custom_call.1} parent=35 // pred_check_branch
        %277 = sbr.rel (%p275) target = $region40
      $region39: #{tpu_custom_call.1} parent=35 // pred_region
        %p278 = scmp.lt.s32.totalorder %s23, 1
        %s279 = scalar_select %p278, %s23, 1
        %s280 = smul.addr %s279, 8
        %s281 = scalar_lea.vmem %s0, %s280
      $region40: #{tpu_custom_call.1} parent=35 // pred_fallthru
        _
      // Predicated region
      $region41: #{tpu_custom_call.1} parent=35 // pred_check
        %p282 = pneg %p74
      $region42: #{tpu_custom_call.1} parent=35 // pred_check_branch
        %284 = sbr.rel (%p282) target = $region44
      $region43: #{tpu_custom_call.1} parent=35 // pred_region
        %p285 = scmp.lt.s32.totalorder %s23, 1
        %s286 = scalar_select %p285, %s23, 1
        %s287 = scalar_lea.vmem %s1, %s286
      $region44: #{tpu_custom_call.1} parent=35 // pred_fallthru
        _
      // Predicated region
      $region45: #{tpu_custom_call.1} parent=35 // pred_check
        %p288 = pneg %p102
      $region46: #{tpu_custom_call.1} parent=35 // pred_check_branch
        %290 = sbr.rel (%p288) target = $region48
      $region47: #{tpu_custom_call.1} parent=35 // pred_region
        %p291 = scmp.lt.s32.totalorder %s23, 1
        %s292 = scalar_select %p291, %s23, 1
        %p293 = scmp.lt.s32.totalorder %s24, 0
        %s294 = scalar_select %p293, %s24, 0
        %s295 = sadd.s32 %s294, %s292
        %s296 = smul.addr %s295, 8
        %s297 = scalar_lea.vmem %s2, %s296
      $region48: #{tpu_custom_call.1} parent=35 // pred_fallthru
        _
    $region36: #{tpu_custom_call.1} parent=5 // pred_fallthru
      _
    %p298 = scmp.le.s32.totalorder 1, %s16
    %p299 = scmp.lt.s32.totalorder %s16, 3
    %p300 = pnand %p298, %p299
    %p301 = pneg %p300
    // Predicated region
    $region49: #{tpu_custom_call.1} parent=5 // pred_check
      _
    $region50: #{tpu_custom_call.1} parent=5 // pred_check_branch
      %303 = sbr.rel (%p300) target = $region52
    $region51: #{tpu_custom_call.1} parent=5 // pred_region
      %s304 = ssub.s32 %s16, 1
      %p305 = scmp.lt.s32.totalorder %s25, 1
      %s306 = scalar_select %p305, %s25, 1
      %s307 = smul.addr %s306, 8
      %s308 = scalar_lea.vmem %s0, %s307
      %p309 = pneg %p54
      %p310 = pneg %p51
      %p311 = scmp.lt.s32.totalorder %s25, 1
      %s312 = scalar_select %p311, %s25, 1
      %s313 = scalar_lea.vmem %s1, %s312
      %p314 = pneg %p80
      %p315 = pneg %p77
      %p316 = scmp.lt.s32.totalorder %s25, 1
      %s317 = scalar_select %p316, %s25, 1
      %p318 = scmp.lt.s32.totalorder %s26, 0
      %s319 = scalar_select %p318, %s26, 0
      %s320 = sadd.s32 %s319, %s317
      %s321 = smul.addr %s320, 8
      %s322 = scalar_lea.vmem %s2, %s321
      %p323 = pneg %p108
      %p324 = pneg %p105
      %p325 = pneg %p129
      %p326 = pneg %p126
      %p327 = pneg %p150
      %p328 = pneg %p147
      %p329 = pneg %p171
      %p330 = pneg %p168
      %p331 = pneg %p192
      %p332 = pneg %p189
      %p333 = pneg %p213
      %p334 = pneg %p210
      %p335 = pneg %p241
      %p336 = pneg %p238
      %p337 = scmp.lt.s32.totalorder %s25, 1
      %s338 = scalar_select %p337, %s25, 1
      %p339 = scmp.lt.s32.totalorder %s26, 0
      %s340 = scalar_select %p339, %s26, 0
      %s341 = smul.addr %s340, 2
      %s342 = smul.addr %s338, 2
      %s343 = sadd.s32 %s341, %s342
      %s344 = smul.addr %s343, 8
      %s345 = scalar_lea.vmem %s8, %s344
      %p346 = scmp.lt.s32.totalorder %s25, 1
      %s347 = scalar_select %p346, %s25, 1
      %s348 = smul.addr %s347, 8
      %s349 = scalar_lea.vmem %s0, %s348
      %p350 = scmp.lt.s32.totalorder %s25, 1
      %s351 = scalar_select %p350, %s25, 1
      %s352 = scalar_lea.vmem %s1, %s351
      %p353 = scmp.lt.s32.totalorder %s25, 1
      %s354 = scalar_select %p353, %s25, 1
      %p355 = scmp.lt.s32.totalorder %s26, 0
      %s356 = scalar_select %p355, %s26, 0
      %s357 = sadd.s32 %s356, %s354
      %s358 = smul.addr %s357, 8
      %s359 = scalar_lea.vmem %s2, %s358
      %p360 = scmp.lt.s32.totalorder %s25, 1
      %s361 = scalar_select %p360, %s25, 1
      %p362 = scmp.lt.s32.totalorder %s26, 0
      %s363 = scalar_select %p362, %s26, 0
      %s364 = smul.addr %s363, 2
      %s365 = smul.addr %s361, 2
      %s366 = sadd.s32 %s364, %s365
      %s367 = smul.addr %s366, 8
      %s368 = scalar_lea.vmem %s8, %s367
      %v369 = vld [vmem:[%s349] sm:$0xff]
      %v370 = vld [vmem:[%s359] sm:$0x3f]
      %v371 = vld [vmem:[%s3] sm:$0x1]
      %v372 = vld [vmem:[%s5] sm:$0x1]
      %v374 = vlaneseq
      %v375 = vshrl.u32 %v374, 7
      %v376 = vsub.s32 0, %v375
      %v377 = vrot.slane %v372, %v376
      %v379 = vmul.f32 %v377, %v369
      %v380 = vld [vmem:[%s4] sm:$0x1]
      %v382 = vlaneseq
      %v383 = vshrl.u32 %v382, 7
      %v384 = vsub.s32 0, %v383
      %v385 = vrot.slane %v380, %v384
      %v387 = vmul.f32 %v370, %v385
      %vm388 = vcmask 1045504
      %v389 = vsel %vm388, %v387, 0.0
      %390 = vadd.xlane.f32.xlu0 %v389
      %v391 = vpop.xlane.xlu0 %390
      %v392 = vld [vmem:[%s352] sm:$0x1]
      %v393 = vsub.f32 1.0, %v392
      %v394 = vmul.f32 %v393, -10000.0
      %395 = vmatprep.subr.mxu0 0.0
      %396 = vmatpush1.xpose.msra.mxu0 %v369
      %397 = vmatprep.subr.mxu0 0.0
      %398 = vmatpush1.xpose.msra.mxu0 0.0
      %399 = vmatprep.subr.mxu0 0.0
      %400 = vmatpush1.xpose.msra.mxu0 0.0
      %401 = vmatprep.subr.mxu0 0.0
      %402 = vmatpush1.xpose.msra.mxu0 0.0
      %403 = vmatprep.subr.mxu0 0.0
      %404 = vmatpush1.xpose.msra.mxu0 0.0
      %405 = vmatprep.subr.mxu0 0.0
      %406 = vmatpush1.xpose.msra.mxu0 0.0
      %407 = vmatprep.subr.mxu0 0.0
      %408 = vmatpush1.xpose.msra.mxu0 0.0
      %409 = vmatprep.subr.mxu0 0.0
      %410 = vmatpush1.xpose.msra.mxu0 0.0
      %411 = vmatprep.subr.mxu0 0.0
      %412 = vmatpush1.xpose.msra.mxu0 0.0
      %413 = vmatprep.subr.mxu0 0.0
      %414 = vmatpush1.xpose.msra.mxu0 0.0
      %415 = vmatprep.subr.mxu0 0.0
      %416 = vmatpush1.xpose.msra.mxu0 0.0
      %417 = vmatprep.subr.mxu0 0.0
      %418 = vmatpush1.xpose.msra.mxu0 0.0
      %419 = vmatprep.subr.mxu0 0.0
      %420 = vmatpush1.xpose.msra.mxu0 0.0
      %421 = vmatprep.subr.mxu0 0.0
      %422 = vmatpush1.xpose.msra.mxu0 0.0
      %423 = vmatprep.subr.mxu0 0.0
      %424 = vmatpush1.xpose.msra.mxu0 0.0
      %425 = vmatprep.subr.mxu0 0.0
      %426 = vmatpush1.xpose.msra.mxu0 0.0
      %427 = vmatprep.subr.mxu0 0.0
      %428 = vmatpush1.xpose.msra.mxu0 0.0
      %429 = vmatprep.subr.mxu0 0.0
      %430 = vmatpush1.xpose.msra.mxu0 0.0
      %431 = vmatprep.subr.mxu0 0.0
      %432 = vmatpush1.xpose.msra.mxu0 0.0
      %433 = vmatprep.subr.mxu0 0.0
      %434 = vmatpush1.xpose.msra.mxu0 0.0
      %435 = vmatprep.subr.mxu0 0.0
      %436 = vmatpush1.xpose.msra.mxu0 0.0
      %437 = vmatprep.subr.mxu0 0.0
      %438 = vmatpush1.xpose.msra.mxu0 0.0
      %439 = vmatprep.subr.mxu0 0.0
      %440 = vmatpush1.xpose.msra.mxu0 0.0
      %441 = vmatprep.subr.mxu0 0.0
      %442 = vmatpush1.xpose.msra.mxu0 0.0
      %443 = vmatprep.subr.mxu0 0.0
      %444 = vmatpush1.xpose.msra.mxu0 0.0
      %445 = vmatprep.subr.mxu0 0.0
      %446 = vmatpush1.xpose.msra.mxu0 0.0
      %447 = vmatprep.subr.mxu0 0.0
      %448 = vmatpush1.xpose.msra.mxu0 0.0
      %449 = vmatprep.subr.mxu0 0.0
      %450 = vmatpush1.xpose.msra.mxu0 0.0
      %451 = vmatprep.subr.mxu0 0.0
      %452 = vmatpush1.xpose.msra.mxu0 0.0
      %453 = vmatprep.subr.mxu0 0.0
      %454 = vmatpush1.xpose.msra.mxu0 0.0
      %455 = vmatprep.subr.mxu0 0.0
      %456 = vmatpush1.xpose.msra.mxu0 0.0
      %457 = vmatprep.subr.mxu0 0.0
      %458 = vmatpush1.xpose.msra.mxu0 0.0
      %459 = vmatprep.mubr.f32.mxu0 0.0
      %460 = vmatmul.mubr.f32.gmra.mrb[0].mxu0 %v371
      %v461 = vpop.f32.mrb[0].mxu0
      %v462 = vadd.f32 %v394, %v461
      %v463 = vpop.f32.mrb[0].mxu0
      %464 = vdwg.mxu0
      %s465 = sld [smem:[#allocation2]]
      %v466 = vstv %s465
      %v467 = vadd.f32 %v462, %v466
      %s468 = sld [smem:[#allocation3]]
      %v469 = vstv %s468
      %v470 = vadd.f32 %v391, %v469
      %v471 = vlaneseq
      %v472 = vshrl.u32 %v471, 7
      %v473 = vsub.s32 0, %v472
      %v474 = vrot.slane %v467, %v473
      %475 = vmatprep.subr.mxu0 0.0
      %476 = vmatpush1.xpose.msra.mxu0 %v379
      %477 = vmatprep.subr.mxu0 0.0
      %478 = vmatpush1.xpose.msra.mxu0 0.0
      %479 = vmatprep.subr.mxu0 0.0
      %480 = vmatpush1.xpose.msra.mxu0 0.0
      %481 = vmatprep.subr.mxu0 0.0
      %482 = vmatpush1.xpose.msra.mxu0 0.0
      %483 = vmatprep.subr.mxu0 0.0
      %484 = vmatpush1.xpose.msra.mxu0 0.0
      %485 = vmatprep.subr.mxu0 0.0
      %486 = vmatpush1.xpose.msra.mxu0 0.0
      %487 = vmatprep.subr.mxu0 0.0
      %488 = vmatpush1.xpose.msra.mxu0 0.0
      %489 = vmatprep.subr.mxu0 0.0
      %490 = vmatpush1.xpose.msra.mxu0 0.0
      %491 = vmatprep.subr.mxu0 0.0
      %492 = vmatpush1.xpose.msra.mxu0 0.0
      %493 = vmatprep.subr.mxu0 0.0
      %494 = vmatpush1.xpose.msra.mxu0 0.0
      %495 = vmatprep.subr.mxu0 0.0
      %496 = vmatpush1.xpose.msra.mxu0 0.0
      %497 = vmatprep.subr.mxu0 0.0
      %498 = vmatpush1.xpose.msra.mxu0 0.0
      %499 = vmatprep.subr.mxu0 0.0
      %500 = vmatpush1.xpose.msra.mxu0 0.0
      %501 = vmatprep.subr.mxu0 0.0
      %502 = vmatpush1.xpose.msra.mxu0 0.0
      %503 = vmatprep.subr.mxu0 0.0
      %504 = vmatpush1.xpose.msra.mxu0 0.0
      %505 = vmatprep.subr.mxu0 0.0
      %506 = vmatpush1.xpose.msra.mxu0 0.0
      %507 = vmatprep.subr.mxu0 0.0
      %508 = vmatpush1.xpose.msra.mxu0 0.0
      %509 = vmatprep.subr.mxu0 0.0
      %510 = vmatpush1.xpose.msra.mxu0 0.0
      %511 = vmatprep.subr.mxu0 0.0
      %512 = vmatpush1.xpose.msra.mxu0 0.0
      %513 = vmatprep.subr.mxu0 0.0
      %514 = vmatpush1.xpose.msra.mxu0 0.0
      %515 = vmatprep.subr.mxu0 0.0
      %516 = vmatpush1.xpose.msra.mxu0 0.0
      %517 = vmatprep.subr.mxu0 0.0
      %518 = vmatpush1.xpose.msra.mxu0 0.0
      %519 = vmatprep.subr.mxu0 0.0
      %520 = vmatpush1.xpose.msra.mxu0 0.0
      %521 = vmatprep.subr.mxu0 0.0
      %522 = vmatpush1.xpose.msra.mxu0 0.0
      %523 = vmatprep.subr.mxu0 0.0
      %524 = vmatpush1.xpose.msra.mxu0 0.0
      %525 = vmatprep.subr.mxu0 0.0
      %526 = vmatpush1.xpose.msra.mxu0 0.0
      %527 = vmatprep.subr.mxu0 0.0
      %528 = vmatpush1.xpose.msra.mxu0 0.0
      %529 = vmatprep.subr.mxu0 0.0
      %530 = vmatpush1.xpose.msra.mxu0 0.0
      %531 = vmatprep.subr.mxu0 0.0
      %532 = vmatpush1.xpose.msra.mxu0 0.0
      %533 = vmatprep.subr.mxu0 0.0
      %534 = vmatpush1.xpose.msra.mxu0 0.0
      %535 = vmatprep.subr.mxu0 0.0
      %536 = vmatpush1.xpose.msra.mxu0 0.0
      %537 = vmatprep.subr.mxu0 0.0
      %538 = vmatpush1.xpose.msra.mxu0 0.0
      %539 = vmatprep.mubr.f32.mxu0 0.0
      %540 = vmatmul.mubr.f32.gmra.mrb[0].mxu0 %v370
      %v541 = vpop.f32.mrb[0].mxu0
      %v542 = vadd.f32 %v474, %v541
      %v543 = vpop.f32.mrb[0].mxu0
      %544 = vdwg.mxu0
      %v545 = vadd.f32 %v542, %v470
      %vm546 = vcmask 62464
      %v547 = vsel %vm546, %v545, -inf
      %548 = vmax.xlane.f32.xlu0 %v547
      %v549 = vpop.xlane.xlu0 %548
      %v550 = vsub.f32 %v545, %v549
      %v551 = vmul.f32 %v550, 1.442695
      %v552 = vpow.pop %v551
      %v553 = vsel %vm546, %v552, 0.0
      %554 = vadd.xlane.f32.xlu0 %v553
      %v555 = vpop.xlane.xlu0 %554
      %vm556 = vcmask 64512
      %v558 = vsel %vm556, %v552, 0
      %560 = vmatprep.subr.mxu0 0.0
      %561 = vmatpush1.msra.mxu0 %v369
      %562 = vmatprep.subr.mxu0 0.0
      %563 = vmatpush1.msra.mxu0 0.0
      %564 = vmatprep.subr.mxu0 0.0
      %565 = vmatpush1.msra.mxu0 0.0
      %566 = vmatprep.subr.mxu0 0.0
      %567 = vmatpush1.msra.mxu0 0.0
      %568 = vmatprep.subr.mxu0 0.0
      %569 = vmatpush1.msra.mxu0 0.0
      %570 = vmatprep.subr.mxu0 0.0
      %571 = vmatpush1.msra.mxu0 0.0
      %572 = vmatprep.subr.mxu0 0.0
      %573 = vmatpush1.msra.mxu0 0.0
      %574 = vmatprep.subr.mxu0 0.0
      %575 = vmatpush1.msra.mxu0 0.0
      %576 = vmatprep.subr.mxu0 0.0
      %577 = vmatpush1.msra.mxu0 0.0
      %578 = vmatprep.subr.mxu0 0.0
      %579 = vmatpush1.msra.mxu0 0.0
      %580 = vmatprep.subr.mxu0 0.0
      %581 = vmatpush1.msra.mxu0 0.0
      %582 = vmatprep.subr.mxu0 0.0
      %583 = vmatpush1.msra.mxu0 0.0
      %584 = vmatprep.subr.mxu0 0.0
      %585 = vmatpush1.msra.mxu0 0.0
      %586 = vmatprep.subr.mxu0 0.0
      %587 = vmatpush1.msra.mxu0 0.0
      %588 = vmatprep.subr.mxu0 0.0
      %589 = vmatpush1.msra.mxu0 0.0
      %590 = vmatprep.subr.mxu0 0.0
      %591 = vmatpush1.msra.mxu0 0.0
      %592 = vmatprep.subr.mxu0 0.0
      %593 = vmatpush1.msra.mxu0 0.0
      %594 = vmatprep.subr.mxu0 0.0
      %595 = vmatpush1.msra.mxu0 0.0
      %596 = vmatprep.subr.mxu0 0.0
      %597 = vmatpush1.msra.mxu0 0.0
      %598 = vmatprep.subr.mxu0 0.0
      %599 = vmatpush1.msra.mxu0 0.0
      %600 = vmatprep.subr.mxu0 0.0
      %601 = vmatpush1.msra.mxu0 0.0
      %602 = vmatprep.subr.mxu0 0.0
      %603 = vmatpush1.msra.mxu0 0.0
      %604 = vmatprep.subr.mxu0 0.0
      %605 = vmatpush1.msra.mxu0 0.0
      %606 = vmatprep.subr.mxu0 0.0
      %607 = vmatpush1.msra.mxu0 0.0
      %608 = vmatprep.subr.mxu0 0.0
      %609 = vmatpush1.msra.mxu0 0.0
      %610 = vmatprep.subr.mxu0 0.0
      %611 = vmatpush1.msra.mxu0 0.0
      %612 = vmatprep.subr.mxu0 0.0
      %613 = vmatpush1.msra.mxu0 0.0
      %614 = vmatprep.subr.mxu0 0.0
      %615 = vmatpush1.msra.mxu0 0.0
      %616 = vmatprep.subr.mxu0 0.0
      %617 = vmatpush1.msra.mxu0 0.0
      %618 = vmatprep.subr.mxu0 0.0
      %619 = vmatpush1.msra.mxu0 0.0
      %620 = vmatprep.subr.mxu0 0.0
      %621 = vmatpush1.msra.mxu0 0.0
      %622 = vmatprep.subr.mxu0 0.0
      %623 = vmatpush1.msra.mxu0 0.0
      %624 = vmatprep.mubr.f32.mxu0 0.0
      %625 = vmatmul.mubr.f32.gmra.mrb[0].mxu0 %v558
      %v626 = vpop.f32.mrb[0].mxu0
      %v627 = vadd.f32 0.0, %v626
      %v628 = vpop.f32.mrb[0].mxu0
      %629 = vdwg.mxu0
      %v630 = vrcp.pop %v555
      %v631 = vmul.f32 %v627, %v630
      %v632 = vsub.f32 %v370, %v631
      %v633 = vmul.f32 %v370, %v631
      %634 = vst [vmem:[%s368] sm:$0x3f] %v632
      %635 = vst [vmem:[%s368 + $0x8] sm:$0x3f] %v633
      %p636 = scmp.lt.s32.totalorder %s25, 1
      %s637 = scalar_select %p636, %s25, 1
      %p638 = scmp.lt.s32.totalorder %s26, 0
      %s639 = scalar_select %p638, %s26, 0
      %s640 = smul.addr %s639, 2
      %s641 = smul.addr %s637, 2
      %s642 = sadd.s32 %s640, %s641
      %s643 = smul.addr %s642, 8
      %s644 = scalar_lea.vmem %s8, %s643
      // Predicated region
      $region53: #{tpu_custom_call.1} parent=51 // pred_check
        %p645 = pneg %p238
      $region54: #{tpu_custom_call.1} parent=51 // pred_check_branch
        %647 = sbr.rel (%p645) target = $region56
      $region55: #{tpu_custom_call.1} parent=51 // pred_region
        _
      $region56: #{tpu_custom_call.1} parent=51 // pred_fallthru
        _
    $region52: #{tpu_custom_call.1} parent=5 // pred_fallthru
      _
    %p648 = scmp.le.s32.totalorder 2, %s16
    // Predicated region
    $region57: #{tpu_custom_call.1} parent=5 // pred_check
      %p649 = pneg %p648
    $region58: #{tpu_custom_call.1} parent=5 // pred_check_branch
      %651 = sbr.rel (%p649) target = $region60
    $region59: #{tpu_custom_call.1} parent=5 // pred_region
      %s652 = ssub.s32 %s16, 2
      // Predicated region
      $region61: #{tpu_custom_call.1} parent=59 // pred_check
        %p653 = pneg %p244
      $region62: #{tpu_custom_call.1} parent=59 // pred_check_branch
        %655 = sbr.rel (%p653) target = $region64
      $region63: #{tpu_custom_call.1} parent=59 // pred_region
        %p656 = scmp.lt.s32.totalorder %s27, 1
        %s657 = scalar_select %p656, %s27, 1
        %p658 = scmp.lt.s32.totalorder %s28, 0
        %s659 = scalar_select %p658, %s28, 0
        %s660 = smul.addr %s659, 2
        %s661 = smul.addr %s657, 2
        %s662 = sadd.s32 %s660, %s661
        %s663 = smul.addr %s662, 8
        %s664 = scalar_lea.vmem %s8, %s663
      $region64: #{tpu_custom_call.1} parent=59 // pred_fallthru
        _
    $region60: #{tpu_custom_call.1} parent=5 // pred_fallthru
      _
  $region6: #{tpu_custom_call.1} parent=0 // loop_footer
    %s20 = sadd.s32 1, %s16
  $region7: #{tpu_custom_call.1} parent=0 // loop_footer_branch
    %15 = sbr.rel target = $region3
  $region8: #{tpu_custom_call.1} parent=0 // loop_exit
    _

</llo_original>
